<compile_context>
chip_gen: v7x
topology: tpu7x:2x2x1
jax: 0.10.0
libtpu: 0.0.40
codegen_flags: <defaults>
</compile_context>

<pallas_src>
from functools import partial

import jax
import jax.numpy as jnp
from jax.experimental import pallas as pl
from jax.experimental.pallas import tpu as pltpu

IN_DIM = 9        # flattened 3x3 grid observation
HIDDEN = 32
N_ACTIONS = 4
HEAD_OUT = 8      # 4 actor logits + 1 value + 3 zero-padded rows (fused head output)


def actor_critic_kernel(xt_ref, wfc_ref, bfc_ref, wh_ref, bh_ref, out_ref):
    # Feature-major: batch rides the 128-lane axis everywhere.
    xt = xt_ref[...]                                                       # [9,  TB]
    h = jnp.dot(wfc_ref[...], xt, preferred_element_type=jnp.float32)      # [32, TB]
    h = jnp.maximum(h + bfc_ref[...], 0.0)

    # Fused actor + critic head: one MXU matmul -> [8, TB]
    fused = jnp.dot(wh_ref[...], h, preferred_element_type=jnp.float32)    # [8,  TB]
    fused = fused + bh_ref[...]

    # Softmax over the 4 logit rows (sublane axis); per-lane (per-sample) reductions.
    row = jax.lax.broadcasted_iota(jnp.int32, fused.shape, 0)
    is_logit = row < N_ACTIONS
    masked = jnp.where(is_logit, fused, -jnp.inf)
    m = jnp.max(masked, axis=0, keepdims=True)                # ignores -inf rows
    e = jnp.exp(masked - m)                                   # non-logit rows -> 0
    inv = pl.reciprocal(jnp.sum(e, axis=0, keepdims=True), approx=False)   # exact
    # rows 0:3 = action probs, row 4 = value, rows 5:7 = 0 (zero-padded head weights)
    out_ref[...] = jnp.where(is_logit, e * inv, fused)


def prepare_params(params):
    """Host-side, once: transpose to feature-major and fuse actor/critic heads.

    Returns (wfc_t [32,9], bfc_t [32,1], wh_t [8,32], bh_t [8,1])."""
    wfc, bfc, wa, ba, wc, bc = params
    pad_w = jnp.zeros((HIDDEN, HEAD_OUT - N_ACTIONS - 1), jnp.float32)
    pad_b = jnp.zeros((1, HEAD_OUT - N_ACTIONS - 1), jnp.float32)
    wfc_t = wfc.T                                                   # [32, 9]
    bfc_t = bfc.reshape(HIDDEN, 1)                                  # [32, 1]
    wh_t = jnp.concatenate([wa, wc, pad_w], axis=1).T               # [8, 32]
    bh_t = jnp.concatenate([ba, bc, pad_b], axis=1).reshape(HEAD_OUT, 1)  # [8, 1]
    return (wfc_t, bfc_t, wh_t, bh_t)


def _round_up(n, m):
    return ((n + m - 1) // m) * m


def _vmem_block_bytes(rows, cols, itemsize=4):
    # f32 VMEM residency of one block after (8, 128) tile padding.
    return _round_up(max(rows, 1), 8) * _round_up(max(cols, 1), 128) * itemsize


def _choose_tb(batch, tb):
    if tb >= batch:
        return batch                      # single tile: lane extent == full array dim (legal)
    return max(128, (tb // 128) * 128)    # otherwise keep the lane tile a multiple of 128


def actor_critic_forward_fm(x_fm, prepared, *, tb=32768):
    """Feature-major forward. x_fm: [IN_DIM, B] float32.

    Returns the fused feature-major output [HEAD_OUT, B]:
      rows 0:4 = softmax action probs, row 4 = value, rows 5:8 = zeros.
    Consumers that can index this directly avoid any extra HBM passes."""
    B = x_fm.shape[1]
    wfc_t, bfc_t, wh_t, bh_t = prepared

    tb = _choose_tb(B, tb)
    num_tiles = pl.cdiv(B, tb)
    grid = (num_tiles,)

    # Deeper input pipelining only pays off (and only makes sense) on longer grids.
    x_pipeline = pl.Buffered(3) if num_tiles > 2 else None
    n_x_bufs = 3 if num_tiles > 2 else 2

    # Explicit VMEM budget (covers double/triple-buffered streamed blocks + resident weights);
    # clamped so it stays inside v5e/v6e (128 MiB) and v7x (64 MiB) physical VMEM with headroom.
    need = (n_x_bufs * _vmem_block_bytes(IN_DIM, tb)
            + 2 * _vmem_block_bytes(HEAD_OUT, tb)
            + _vmem_block_bytes(HIDDEN, IN_DIM) + _vmem_block_bytes(HIDDEN, 1)
            + _vmem_block_bytes(HEAD_OUT, HIDDEN) + _vmem_block_bytes(HEAD_OUT, 1))
    vmem_limit = int(min(max(2 * need, 32 * 1024 * 1024), 48 * 1024 * 1024))

    out = pl.pallas_call(
        actor_critic_kernel,
        out_shape=jax.ShapeDtypeStruct((HEAD_OUT, B), jnp.float32),
        grid=grid,
        in_specs=[
            # batch-streamed x tiles, lane-dense, 3-deep pipelined on long grids
            pl.BlockSpec((IN_DIM, tb), lambda i: (0, i), pipeline_mode=x_pipeline),
            # weights / biases: constant index maps -> fetched once, VMEM-resident
            pl.BlockSpec((HIDDEN, IN_DIM), lambda i: (0, 0)),
            pl.BlockSpec((HIDDEN, 1), lambda i: (0, 0)),
            pl.BlockSpec((HEAD_OUT, HIDDEN), lambda i: (0, 0)),
            pl.BlockSpec((HEAD_OUT, 1), lambda i: (0, 0)),
        ],
        out_specs=pl.BlockSpec((HEAD_OUT, tb), lambda i: (0, i)),
        compiler_params=pltpu.CompilerParams(
            # On v7x, pltpu.CORE_PARALLEL here makes the megacore split of batch
            # tiles across both TensorCores explicit; "parallel" is safe everywhere.
            dimension_semantics=("parallel",),
            vmem_limit_bytes=vmem_limit,
        ),
    )(x_fm, wfc_t, bfc_t, wh_t, bh_t)
    return out


@partial(jax.jit, static_argnames=("tb",))
def actor_critic_forward(x, prepared, *, tb=32768):
    """Module-compatible forward. x: [B, 9] float32.
    Returns (action_prob [B, 4], value [B, 1]).  jit-wrapped so the transpose /
    slice plumbing fuses with the surrounding graph instead of extra HBM passes."""
    out_fm = actor_critic_forward_fm(x.T, prepared, tb=tb)       # [8, B]
    action_prob = out_fm[:N_ACTIONS, :].T                        # [B, 4]
    value = out_fm[N_ACTIONS:N_ACTIONS + 1, :].T                 # [B, 1]
    return action_prob, value


def init_params(key):
    """Deterministic init matching PyTorch nn.Linear shapes (weights stored as [in, out]).

    fc:     W [9, 32], b [1, 32]
    actor:  W [32, 4], b [1, 4]
    critic: W [32, 1], b [1, 1]
    U(-1/sqrt(fan_in), 1/sqrt(fan_in)) like torch's default Linear init.
    """
    k = jax.random.split(key, 6)

    def uniform(k, shape, fan_in):
        bound = 1.0 / jnp.sqrt(jnp.float32(fan_in))
        return jax.random.uniform(k, shape, jnp.float32, -bound, bound)

    wfc = uniform(k[0], (IN_DIM, HIDDEN), IN_DIM)
    bfc = uniform(k[1], (1, HIDDEN), IN_DIM)
    wa = uniform(k[2], (HIDDEN, N_ACTIONS), HIDDEN)
    ba = uniform(k[3], (1, N_ACTIONS), HIDDEN)
    wc = uniform(k[4], (HIDDEN, 1), HIDDEN)
    bc = uniform(k[5], (1, 1), HIDDEN)
    return (wfc, bfc, wa, ba, wc, bc)


def reference_forward(x, params):
    wfc, bfc, wa, ba, wc, bc = params
    h = jnp.maximum(x @ wfc + bfc, 0.0)
    prob = jax.nn.softmax(h @ wa + ba, axis=-1)
    value = h @ wc + bc
    return prob, value


if __name__ == "__main__":
    key = jax.random.PRNGKey(0)
    kx, kp = jax.random.split(key)

    params = init_params(kp)
    prepared = prepare_params(params)

    # Small batch consistent with the module (3x3 grid observations flattened to 9).
    B = 8
    x = jax.random.normal(kx, (B, IN_DIM), jnp.float32)
    prob, value = actor_critic_forward(x, prepared)
    jax.block_until_ready((prob, value))

    prob_ref, value_ref = reference_forward(x, params)
    assert prob.shape == (B, N_ACTIONS) and value.shape == (B, 1)
    assert jnp.allclose(prob, prob_ref, atol=1e-4, rtol=1e-4)
    assert jnp.allclose(value, value_ref, atol=1e-4, rtol=1e-4)
    assert jnp.allclose(jnp.sum(prob, axis=-1), 1.0, atol=1e-5)

    # Larger batch: exercises multi-tile streaming, Buffered(3) pipelining and a
    # ragged edge tile (1000 % 256 != 0).
    B2 = 1000
    x2 = jax.random.normal(kx, (B2, IN_DIM), jnp.float32)
    prob2, value2 = actor_critic_forward(x2, prepared, tb=256)
    jax.block_until_ready((prob2, value2))

    prob2_ref, value2_ref = reference_forward(x2, params)
    assert prob2.shape == (B2, N_ACTIONS) and value2.shape == (B2, 1)
    assert jnp.allclose(prob2, prob2_ref, atol=1e-4, rtol=1e-4)
    assert jnp.allclose(value2, value2_ref, atol=1e-4, rtol=1e-4)
    assert jnp.allclose(jnp.sum(prob2, axis=-1), 1.0, atol=1e-5)

    print("KERNEL_OK")
</pallas_src>

<mosaic_0001>
module attributes {stable_mosaic.version = 11 : i64} {
  func.func @actor_critic_kernel(%arg0: i32, %arg1: memref<9x8xf32, #tpu.memory_space<vmem>>, %arg2: memref<32x9xf32, #tpu.memory_space<vmem>>, %arg3: memref<32x1xf32, #tpu.memory_space<vmem>>, %arg4: memref<8x32xf32, #tpu.memory_space<vmem>>, %arg5: memref<8x1xf32, #tpu.memory_space<vmem>>, %arg6: memref<8x8xf32, #tpu.memory_space<vmem>>) attributes {dimension_semantics = [#tpu.dimension_semantics<parallel>], iteration_bounds = array<i64: 1>, scalar_prefetch = 0 : i64, scratch_operands = 0 : i64, tpu.core_type = #tpu.core_type<tc>, window_params = [{transform_indices = @transform_0, window_bounds = array<i64: 9, 8>}, {pipeline_mode = #tpu.pipeline_mode<synchronous>, transform_indices = @transform_1, window_bounds = array<i64: 32, 9>}, {pipeline_mode = #tpu.pipeline_mode<synchronous>, transform_indices = @transform_2, window_bounds = array<i64: 32, 1>}, {pipeline_mode = #tpu.pipeline_mode<synchronous>, transform_indices = @transform_3, window_bounds = array<i64: 8, 32>}, {pipeline_mode = #tpu.pipeline_mode<synchronous>, transform_indices = @transform_4, window_bounds = array<i64: 8, 1>}, {transform_indices = @transform_5, window_bounds = array<i64: 8, 8>}]} {
    %c0 = arith.constant 0 : index
    %c0_0 = arith.constant 0 : index
    %0 = vector.load %arg1[%c0, %c0_0] : memref<9x8xf32, #tpu.memory_space<vmem>>, vector<9x8xf32>
    %c0_1 = arith.constant 0 : index
    %c0_2 = arith.constant 0 : index
    %1 = vector.load %arg2[%c0_1, %c0_2] : memref<32x9xf32, #tpu.memory_space<vmem>>, vector<32x9xf32>
    %cst = arith.constant dense<0.000000e+00> : vector<32x8xf32>
    %2 = tpu.matmul %1, %0, %cst {dimension_numbers = #tpu.dot_dimension_numbers<[1], [0], [0], [1], [0, 0, 1, 1], [], []>} : vector<32x9xf32>, vector<9x8xf32>, vector<32x8xf32> -> vector<32x8xf32>
    %c0_3 = arith.constant 0 : index
    %c0_4 = arith.constant 0 : index
    %3 = vector.load %arg3[%c0_3, %c0_4] : memref<32x1xf32, #tpu.memory_space<vmem>>, vector<32x1xf32>
    %4 = vector.broadcast %3 : vector<32x1xf32> to vector<32x8xf32>
    %5 = arith.addf %2, %4 : vector<32x8xf32>
    %cst_5 = arith.constant 0.000000e+00 : f32
    %6 = vector.broadcast %cst_5 : f32 to vector<32x8xf32>
    %7 = arith.maximumf %5, %6 : vector<32x8xf32>
    %c0_6 = arith.constant 0 : index
    %c0_7 = arith.constant 0 : index
    %8 = vector.load %arg4[%c0_6, %c0_7] : memref<8x32xf32, #tpu.memory_space<vmem>>, vector<8x32xf32>
    %cst_8 = arith.constant dense<0.000000e+00> : vector<8x8xf32>
    %9 = tpu.matmul %8, %7, %cst_8 {dimension_numbers = #tpu.dot_dimension_numbers<[1], [0], [0], [1], [0, 0, 1, 1], [], []>} : vector<8x32xf32>, vector<32x8xf32>, vector<8x8xf32> -> vector<8x8xf32>
    %c0_9 = arith.constant 0 : index
    %c0_10 = arith.constant 0 : index
    %10 = vector.load %arg5[%c0_9, %c0_10] : memref<8x1xf32, #tpu.memory_space<vmem>>, vector<8x1xf32>
    %11 = vector.broadcast %10 : vector<8x1xf32> to vector<8x8xf32>
    %12 = arith.addf %9, %11 : vector<8x8xf32>
    %13 = tpu.iota {dimensions = array<i32: 0>} : vector<8x8xi32>
    %c4_i32 = arith.constant 4 : i32
    %14 = vector.broadcast %c4_i32 : i32 to vector<8x8xi32>
    %15 = arith.cmpi slt, %13, %14 : vector<8x8xi32>
    %cst_11 = arith.constant 0xFF800000 : f32
    %16 = vector.broadcast %cst_11 : f32 to vector<8x8xf32>
    %17 = arith.select %15, %12, %16 : vector<8x8xi1>, vector<8x8xf32>
    %cst_12 = arith.constant dense<0xFF800000> : vector<8xf32>
    %18 = vector.multi_reduction <maximumf>, %17, %cst_12 [0] : vector<8x8xf32> to vector<8xf32>
    %19 = vector.shape_cast %18 : vector<8xf32> to vector<1x8xf32>
    %20 = vector.broadcast %19 : vector<1x8xf32> to vector<8x8xf32>
    %21 = arith.subf %17, %20 : vector<8x8xf32>
    %22 = math.exp %21 : vector<8x8xf32>
    %cst_13 = arith.constant dense<0.000000e+00> : vector<8xf32>
    %23 = vector.multi_reduction <add>, %22, %cst_13 [0] : vector<8x8xf32> to vector<8xf32>
    %24 = vector.shape_cast %23 : vector<8xf32> to vector<1x8xf32>
    %25 = tpu.reciprocal %24 : vector<1x8xf32> -> vector<1x8xf32>
    %26 = vector.broadcast %25 : vector<1x8xf32> to vector<8x8xf32>
    %27 = arith.mulf %22, %26 : vector<8x8xf32>
    %28 = arith.select %15, %27, %12 : vector<8x8xi1>, vector<8x8xf32>
    %c0_14 = arith.constant 0 : index
    %c0_15 = arith.constant 0 : index
    %29 = vector.load %arg6[%c0_14, %c0_15] : memref<8x8xf32, #tpu.memory_space<vmem>>, vector<8x8xf32>
    tpu.vector_store %arg6[%c0_14, %c0_15], %28 {strides = array<i32>} : memref<8x8xf32, #tpu.memory_space<vmem>>, vector<8x8xf32>,
    return
  }
  func.func @transform_0(%arg0: i32) -> (i32, i32) {
    %c0_i32 = arith.constant 0 : i32
    %c0_i32_0 = arith.constant 0 : i32
    return %c0_i32, %arg0 : i32, i32
  }
  func.func @transform_1(%arg0: i32) -> (i32, i32) {
    %c0_i32 = arith.constant 0 : i32
    %c0_i32_0 = arith.constant 0 : i32
    %c0_i32_1 = arith.constant 0 : i32
    return %c0_i32, %c0_i32_0 : i32, i32
  }
  func.func @transform_2(%arg0: i32) -> (i32, i32) {
    %c0_i32 = arith.constant 0 : i32
    %c0_i32_0 = arith.constant 0 : i32
    %c0_i32_1 = arith.constant 0 : i32
    return %c0_i32, %c0_i32_0 : i32, i32
  }
  func.func @transform_3(%arg0: i32) -> (i32, i32) {
    %c0_i32 = arith.constant 0 : i32
    %c0_i32_0 = arith.constant 0 : i32
    %c0_i32_1 = arith.constant 0 : i32
    return %c0_i32, %c0_i32_0 : i32, i32
  }
  func.func @transform_4(%arg0: i32) -> (i32, i32) {
    %c0_i32 = arith.constant 0 : i32
    %c0_i32_0 = arith.constant 0 : i32
    %c0_i32_1 = arith.constant 0 : i32
    return %c0_i32, %c0_i32_0 : i32, i32
  }
  func.func @transform_5(%arg0: i32) -> (i32, i32) {
    %c0_i32 = arith.constant 0 : i32
    %c0_i32_0 = arith.constant 0 : i32
    return %c0_i32, %arg0 : i32, i32
  }
}

</mosaic_0001>

<llo_original>
// kernel: actor_critic_forward.1
$region0: #{actor_critic_forward.1}
  #allocation0 [shape = 'u32[]', space=smem, size = 0x4, offset = 0x4, fixed_abs, tag = 'smem constant byte address 0x4 - core index']
  #allocation1 [shape = 'u32[144,128]{1,0:T(1,128)}', space=vmem, size = 0x12000, scoped, tag = 'internal scratch']
  %s0 = inlined_call_operand.vmem [shape: f32[9,8], index: 0, kind: input, shape index: {}]
  %s1 = inlined_call_operand.vmem [shape: f32[32,9], index: 1, kind: input, shape index: {}]
  %s2 = inlined_call_operand.vmem [shape: f32[32,1], index: 2, kind: input, shape index: {}]
  %s3 = inlined_call_operand.vmem [shape: f32[8,32], index: 3, kind: input, shape index: {}]
  %s4 = inlined_call_operand.vmem [shape: f32[8,1], index: 4, kind: input, shape index: {}]
  %s5 = inlined_call_operand.vmem [shape: f32[8,8], index: 5, kind: output, shape index: {}]
  %s6 = sld [smem:[#allocation0]]
  $region30: #{actor_critic_forward.1} parent=0
    _
  %s8 = ssub.s32 1, %s6
  %s9 = scalar_select 0, %s8, %s6
  // Predicated region
  $region2: #{actor_critic_forward.1} parent=0 // pred_check
    _
  $region3: #{actor_critic_forward.1} parent=0 // pred_check_branch
    %11 = sbr.rel (0) target = $region5
  $region4: #{actor_critic_forward.1} parent=0 // pred_region
    _
  $region5: #{actor_critic_forward.1} parent=0 // pred_fallthru
    _
  // Predicated region
  $region6: #{actor_critic_forward.1} parent=0 // pred_check
    _
  $region7: #{actor_critic_forward.1} parent=0 // pred_check_branch
    %13 = sbr.rel (0) target = $region9
  $region8: #{actor_critic_forward.1} parent=0 // pred_region
    _
  $region9: #{actor_critic_forward.1} parent=0 // pred_fallthru
    _
  // Predicated region
  $region10: #{actor_critic_forward.1} parent=0 // pred_check
    _
  $region11: #{actor_critic_forward.1} parent=0 // pred_check_branch
    %15 = sbr.rel (0) target = $region13
  $region12: #{actor_critic_forward.1} parent=0 // pred_region
    _
  $region13: #{actor_critic_forward.1} parent=0 // pred_fallthru
    _
  // Predicated region
  $region14: #{actor_critic_forward.1} parent=0 // pred_check
    _
  $region15: #{actor_critic_forward.1} parent=0 // pred_check_branch
    %17 = sbr.rel (0) target = $region17
  $region16: #{actor_critic_forward.1} parent=0 // pred_region
    _
  $region17: #{actor_critic_forward.1} parent=0 // pred_fallthru
    _
  // Predicated region
  $region18: #{actor_critic_forward.1} parent=0 // pred_check
    _
  $region19: #{actor_critic_forward.1} parent=0 // pred_check_branch
    %19 = sbr.rel (0) target = $region21
  $region20: #{actor_critic_forward.1} parent=0 // pred_region
    _
  $region21: #{actor_critic_forward.1} parent=0 // pred_fallthru
    _
  %v20 = vld [vmem:[%s0] sm:$0xff]
  %v21 = vld [vmem:[%s0 + $0x8] sm:$0x1]
  %v22 = vld [vmem:[%s1] sm:$0xff]
  %v23 = vld [vmem:[%s1 + $0x8] sm:$0xff]
  %v24 = vld [vmem:[%s1 + $0x10] sm:$0xff]
  %v25 = vld [vmem:[%s1 + $0x18] sm:$0xff]
  %v26 = vld [vmem:[%s2] sm:$0xff]
  %v27 = vld [vmem:[%s2 + $0x8] sm:$0xff]
  %v28 = vld [vmem:[%s2 + $0x10] sm:$0xff]
  %v29 = vld [vmem:[%s2 + $0x18] sm:$0xff]
  %31 = vset.pattern.permute.xlu0 0
  %32 = vperm.xlu0 %31, %v26
  %v33 = vpop.permute.xlu0 %32
  %36 = vset.pattern.permute.xlu0 0
  %37 = vperm.xlu0 %36, %v27
  %v38 = vpop.permute.xlu0 %37
  %41 = vset.pattern.permute.xlu0 0
  %42 = vperm.xlu0 %41, %v28
  %v43 = vpop.permute.xlu0 %42
  %46 = vset.pattern.permute.xlu0 0
  %47 = vperm.xlu0 %46, %v29
  %v48 = vpop.permute.xlu0 %47
  %vm50 = vcmask 72704
  %v52 = vsel %vm50, %v22, 0
  %v55 = vsel %vm50, %v23, 0
  %v58 = vsel %vm50, %v24, 0
  %v61 = vsel %vm50, %v25, 0
  %vm63 = vcmask 1040384
  %v65 = vsel %vm63, %v21, 0
  %67 = vmatprep.subr.mxu0 0.0
  %68 = vmatpush1.msra.mxu0 %v20
  %69 = vmatprep.subr.mxu0 0.0
  %70 = vmatpush1.msra.mxu0 %v65
  %71 = vmatprep.subr.mxu0 0.0
  %72 = vmatpush1.msra.mxu0 0.0
  %73 = vmatprep.subr.mxu0 0.0
  %74 = vmatpush1.msra.mxu0 0.0
  %75 = vmatprep.subr.mxu0 0.0
  %76 = vmatpush1.msra.mxu0 0.0
  %77 = vmatprep.subr.mxu0 0.0
  %78 = vmatpush1.msra.mxu0 0.0
  %79 = vmatprep.subr.mxu0 0.0
  %80 = vmatpush1.msra.mxu0 0.0
  %81 = vmatprep.subr.mxu0 0.0
  %82 = vmatpush1.msra.mxu0 0.0
  %83 = vmatprep.subr.mxu0 0.0
  %84 = vmatpush1.msra.mxu0 0.0
  %85 = vmatprep.subr.mxu0 0.0
  %86 = vmatpush1.msra.mxu0 0.0
  %87 = vmatprep.subr.mxu0 0.0
  %88 = vmatpush1.msra.mxu0 0.0
  %89 = vmatprep.subr.mxu0 0.0
  %90 = vmatpush1.msra.mxu0 0.0
  %91 = vmatprep.subr.mxu0 0.0
  %92 = vmatpush1.msra.mxu0 0.0
  %93 = vmatprep.subr.mxu0 0.0
  %94 = vmatpush1.msra.mxu0 0.0
  %95 = vmatprep.subr.mxu0 0.0
  %96 = vmatpush1.msra.mxu0 0.0
  %97 = vmatprep.subr.mxu0 0.0
  %98 = vmatpush1.msra.mxu0 0.0
  %99 = vmatprep.subr.mxu0 0.0
  %100 = vmatpush1.msra.mxu0 0.0
  %101 = vmatprep.subr.mxu0 0.0
  %102 = vmatpush1.msra.mxu0 0.0
  %103 = vmatprep.subr.mxu0 0.0
  %104 = vmatpush1.msra.mxu0 0.0
  %105 = vmatprep.subr.mxu0 0.0
  %106 = vmatpush1.msra.mxu0 0.0
  %107 = vmatprep.subr.mxu0 0.0
  %108 = vmatpush1.msra.mxu0 0.0
  %109 = vmatprep.subr.mxu0 0.0
  %110 = vmatpush1.msra.mxu0 0.0
  %111 = vmatprep.subr.mxu0 0.0
  %112 = vmatpush1.msra.mxu0 0.0
  %113 = vmatprep.subr.mxu0 0.0
  %114 = vmatpush1.msra.mxu0 0.0
  %115 = vmatprep.subr.mxu0 0.0
  %116 = vmatpush1.msra.mxu0 0.0
  %117 = vmatprep.subr.mxu0 0.0
  %118 = vmatpush1.msra.mxu0 0.0
  %119 = vmatprep.subr.mxu0 0.0
  %120 = vmatpush1.msra.mxu0 0.0
  %121 = vmatprep.subr.mxu0 0.0
  %122 = vmatpush1.msra.mxu0 0.0
  %123 = vmatprep.subr.mxu0 0.0
  %124 = vmatpush1.msra.mxu0 0.0
  %125 = vmatprep.subr.mxu0 0.0
  %126 = vmatpush1.msra.mxu0 0.0
  %127 = vmatprep.subr.mxu0 0.0
  %128 = vmatpush1.msra.mxu0 0.0
  %129 = vmatprep.subr.mxu0 0.0
  %130 = vmatpush1.msra.mxu0 0.0
  %131 = vmatprep.mubr.f32.mxu0 0.0
  %132 = vmatmul.mubr.f32.gmra.mrb[0].mxu0 %v52
  %v133 = vpop.f32.mrb[0].mxu0
  %v134 = vadd.f32 %v33, %v133
  %v135 = vpop.f32.mrb[0].mxu0
  %136 = vmatprep.mubr.f32.mxu0 0.0
  %137 = vmatmul.mubr.f32.gmra.mrb[0].mxu0 %v55
  %v138 = vpop.f32.mrb[0].mxu0
  %v139 = vadd.f32 %v38, %v138
  %v140 = vpop.f32.mrb[0].mxu0
  %141 = vmatprep.mubr.f32.mxu0 0.0
  %142 = vmatmul.mubr.f32.gmra.mrb[0].mxu0 %v58
  %v143 = vpop.f32.mrb[0].mxu0
  %v144 = vadd.f32 %v43, %v143
  %v145 = vpop.f32.mrb[0].mxu0
  %146 = vmatprep.mubr.f32.mxu0 0.0
  %147 = vmatmul.mubr.f32.gmra.mrb[0].mxu0 %v61
  %v148 = vpop.f32.mrb[0].mxu0
  %v149 = vadd.f32 %v48, %v148
  %v150 = vpop.f32.mrb[0].mxu0
  %151 = vdwg.mxu0
  %v152 = vmax.f32 %v134, 0.0
  %v153 = vmax.f32 %v139, 0.0
  %v154 = vmax.f32 %v144, 0.0
  %v155 = vmax.f32 %v149, 0.0
  %v156 = vld [vmem:[%s3] sm:$0xff]
  %v157 = vld [vmem:[%s4] sm:$0xff]
  %159 = vset.pattern.permute.xlu0 0
  %160 = vperm.xlu0 %159, %v157
  %v161 = vpop.permute.xlu0 %160
  %vm163 = vcmask 261120
  %v165 = vsel %vm163, %v156, 0
  %167 = vmatprep.subr.mxu0 0.0
  %168 = vmatpush1.msra.mxu0 %v152
  %169 = vmatprep.subr.mxu0 0.0
  %170 = vmatpush1.msra.mxu0 %v153
  %171 = vmatprep.subr.mxu0 0.0
  %172 = vmatpush1.msra.mxu0 %v154
  %173 = vmatprep.subr.mxu0 0.0
  %174 = vmatpush1.msra.mxu0 %v155
  %175 = vmatprep.subr.mxu0 0.0
  %176 = vmatpush1.msra.mxu0 0.0
  %177 = vmatprep.subr.mxu0 0.0
  %178 = vmatpush1.msra.mxu0 0.0
  %179 = vmatprep.subr.mxu0 0.0
  %180 = vmatpush1.msra.mxu0 0.0
  %181 = vmatprep.subr.mxu0 0.0
  %182 = vmatpush1.msra.mxu0 0.0
  %183 = vmatprep.subr.mxu0 0.0
  %184 = vmatpush1.msra.mxu0 0.0
  %185 = vmatprep.subr.mxu0 0.0
  %186 = vmatpush1.msra.mxu0 0.0
  %187 = vmatprep.subr.mxu0 0.0
  %188 = vmatpush1.msra.mxu0 0.0
  %189 = vmatprep.subr.mxu0 0.0
  %190 = vmatpush1.msra.mxu0 0.0
  %191 = vmatprep.subr.mxu0 0.0
  %192 = vmatpush1.msra.mxu0 0.0
  %193 = vmatprep.subr.mxu0 0.0
  %194 = vmatpush1.msra.mxu0 0.0
  %195 = vmatprep.subr.mxu0 0.0
  %196 = vmatpush1.msra.mxu0 0.0
  %197 = vmatprep.subr.mxu0 0.0
  %198 = vmatpush1.msra.mxu0 0.0
  %199 = vmatprep.subr.mxu0 0.0
  %200 = vmatpush1.msra.mxu0 0.0
  %201 = vmatprep.subr.mxu0 0.0
  %202 = vmatpush1.msra.mxu0 0.0
  %203 = vmatprep.subr.mxu0 0.0
  %204 = vmatpush1.msra.mxu0 0.0
  %205 = vmatprep.subr.mxu0 0.0
  %206 = vmatpush1.msra.mxu0 0.0
  %207 = vmatprep.subr.mxu0 0.0
  %208 = vmatpush1.msra.mxu0 0.0
  %209 = vmatprep.subr.mxu0 0.0
  %210 = vmatpush1.msra.mxu0 0.0
  %211 = vmatprep.subr.mxu0 0.0
  %212 = vmatpush1.msra.mxu0 0.0
  %213 = vmatprep.subr.mxu0 0.0
  %214 = vmatpush1.msra.mxu0 0.0
  %215 = vmatprep.subr.mxu0 0.0
  %216 = vmatpush1.msra.mxu0 0.0
  %217 = vmatprep.subr.mxu0 0.0
  %218 = vmatpush1.msra.mxu0 0.0
  %219 = vmatprep.subr.mxu0 0.0
  %220 = vmatpush1.msra.mxu0 0.0
  %221 = vmatprep.subr.mxu0 0.0
  %222 = vmatpush1.msra.mxu0 0.0
  %223 = vmatprep.subr.mxu0 0.0
  %224 = vmatpush1.msra.mxu0 0.0
  %225 = vmatprep.subr.mxu0 0.0
  %226 = vmatpush1.msra.mxu0 0.0
  %227 = vmatprep.subr.mxu0 0.0
  %228 = vmatpush1.msra.mxu0 0.0
  %229 = vmatprep.subr.mxu0 0.0
  %230 = vmatpush1.msra.mxu0 0.0
  %231 = vmatprep.mubr.f32.mxu0 0.0
  %232 = vmatmul.mubr.f32.gmra.mrb[0].mxu0 %v165
  %v233 = vpop.f32.mrb[0].mxu0
  %v234 = vadd.f32 %v161, %v233
  %v235 = vpop.f32.mrb[0].mxu0
  %236 = vdwg.mxu0
  %v237 = vlaneseq
  %v238 = vshrl.u32 %v237, 7
  %vm239 = vcmp.lt.s32.totalorder %v238, 4
  %v240 = vsel %vm239, %v234, -inf
  %vm241 = vcmask 64512
  %v242 = vsel %vm241, %v240, -inf
  %v243 = vrot.slane %v242, 4
  %v244 = vmax.f32 %v242, %v243
  %v245 = vrot.slane %v244, 2
  %v246 = vmax.f32 %v244, %v245
  %v247 = vrot.slane %v246, 1
  %v248 = vmax.f32 %v246, %v247
  %v249 = vsub.f32 %v240, %v248
  %v250 = vmul.f32 %v249, 1.442695
  %v251 = vpow.pop %v250
  %v252 = vsel %vm241, %v251, 0.0
  %v253 = vrot.slane %v252, 4
  %v254 = vadd.f32 %v252, %v253
  %v255 = vrot.slane %v254, 2
  %v256 = vadd.f32 %v254, %v255
  %v257 = vrot.slane %v256, 1
  %v258 = vadd.f32 %v256, %v257
  %v259 = vrcp.pop %v258
  %v260 = vmul.f32 %v251, %v259
  %v261 = vsel %vm239, %v260, %v234
  %262 = vst.msk [vmem:[%s5] sm:$0xff] %vm241, %v261
  // Predicated region
  $region22: #{actor_critic_forward.1} parent=0 // pred_check
    _
  $region23: #{actor_critic_forward.1} parent=0 // pred_check_branch
    %264 = sbr.rel (0) target = $region25
  $region24: #{actor_critic_forward.1} parent=0 // pred_region
    _
  $region25: #{actor_critic_forward.1} parent=0 // pred_fallthru
    _
  // Predicated region
  $region26: #{actor_critic_forward.1} parent=0 // pred_check
    _
  $region27: #{actor_critic_forward.1} parent=0 // pred_check_branch
    %266 = sbr.rel (0) target = $region29
  $region28: #{actor_critic_forward.1} parent=0 // pred_region
    _
  $region29: #{actor_critic_forward.1} parent=0 // pred_fallthru
    _

</llo_original>
